<compile_context>
chip_gen: v7x
topology: tpu7x:2x2x1
jax: 0.10.0
libtpu: 0.0.40
codegen_flags: <defaults>
</compile_context>

<pallas_src>
import functools

import jax
import jax.numpy as jnp
from jax.experimental import pallas as pl
from jax.experimental.pallas import tpu as pltpu


def _round_up(a, b):
    return (a + b - 1) // b * b


def _vmem_capacity_bytes():
    """Per-TensorCore VMEM capacity; falls back to the smallest (v7x, 64 MiB)."""
    try:
        info = pltpu.get_tpu_info()
        for attr in ("vmem_capacity_bytes", "vmem_bytes"):
            cap = getattr(info, attr, None)
            if cap:
                return int(cap)
    except Exception:
        pass
    return 64 << 20


def _patch_embed_kernel(p_ref, w_ref, b_ref, o_ref):
    # p_ref: (TM, Kp)   bf16 flattened-patches tile
    # w_ref: (Kp, Np)   bf16 projection weight (whole, constant index_map)
    # b_ref: (1, Np)    f32 bias (whole)
    # o_ref: (TM, Np)   output tile (lane-dense: Np % 128 == 0)
    acc = jnp.dot(p_ref[...], w_ref[...], preferred_element_type=jnp.float32)
    o_ref[...] = (acc + b_ref[...]).astype(o_ref.dtype)


def patch_embed_forward(x, weight, bias, patch_size, stride,
                        compute_dtype=jnp.bfloat16, out_dtype=None,
                        tm_target=None):
    """x: (B, C, H, W), weight: (E, C, ph, pw), bias: (E,) -> (B, num_patches, E)."""
    B, C, H, W = x.shape
    E = weight.shape[0]
    ph, pw = patch_size
    sh, sw = stride
    assert (ph, pw) == (sh, sw), "kernel assumes non-overlapping patches (stride == patch_size)"
    # TODO(synk): general stride != patch_size (overlapping conv) not implemented.
    Gh, Gw = H // sh, W // sw
    num_patches = Gh * Gw
    out_dtype = x.dtype if out_dtype is None else out_dtype

    # --- glue: crop (Conv2d silently drops trailing rows/cols), cast to the
    # compute dtype *before* the patch transpose (halves the transpose's write
    # traffic), one reshape/transpose to (M, K).  Under jit this block fuses
    # with the pad below into a single copy.
    x = x[:, :, :Gh * ph, :Gw * pw]
    xp = x.astype(compute_dtype).reshape(B, C, Gh, ph, Gw, pw)
    xp = jnp.transpose(xp, (0, 2, 4, 1, 3, 5))            # (B, Gh, Gw, C, ph, pw)
    patches = xp.reshape(B * num_patches, C * ph * pw)    # (M, K) in Conv2d (c,kh,kw) order

    M, K = patches.shape
    N = E
    out_itemsize = jnp.dtype(out_dtype).itemsize
    cd_itemsize = jnp.dtype(compute_dtype).itemsize

    # Lane-dense blocks: pad the reduction dim K and the embed dim N to 128.
    K_pad = _round_up(K, 128)
    N_pad = _round_up(N, 128)

    # --- generation-aware M-tile selection --------------------------------
    vmem_cap = _vmem_capacity_bytes()
    vmem_budget = (vmem_cap * 5) // 8        # ~62%: ~40 MiB on v7x, ~80 MiB on v5e/v6e
    if tm_target is None:
        tm_target = 2048 if vmem_cap >= (96 << 20) else 512

    def vmem_need(tm):
        return (2 * tm * K_pad * cd_itemsize        # patches tile (double-buffered)
                + 2 * K_pad * N_pad * cd_itemsize   # weight (constant block; x2 = safe bound)
                + 2 * N_pad * 4                     # bias
                + 2 * tm * N_pad * out_itemsize     # output tile (double-buffered)
                + tm * N_pad * 4)                   # in-kernel f32 dot-result temp

    TM = min(tm_target, _round_up(M, 128))
    while TM > 128 and vmem_need(TM) > vmem_budget:
        TM = max(128, _round_up(TM // 2, 128))
    # v7x megacore: dimension_semantics=("parallel",) shards the grid across the
    # two TensorCores -- make sure there are at least 2 grid steps when M allows.
    if _round_up(M, TM) // TM < 2 and M > 128:
        TM = max(128, _round_up(M, 256) // 2)       # 128-aligned ~half split
    M_pad = _round_up(M, TM)

    # --- operand prep: bf16 matmul inputs, f32 bias; padding copies skipped
    # entirely when shapes are already aligned.
    if M_pad != M or K_pad != K:
        patches_p = jnp.pad(patches, ((0, M_pad - M), (0, K_pad - K)))
    else:
        patches_p = patches
    w_mat = weight.reshape(E, K).T.astype(compute_dtype)   # (K, E)
    if K_pad != K or N_pad != N:
        w_p = jnp.pad(w_mat, ((0, K_pad - K), (0, N_pad - N)))
    else:
        w_p = w_mat
    b_p = bias.astype(jnp.float32).reshape(1, E)
    if N_pad != N:
        b_p = jnp.pad(b_p, ((0, 0), (0, N_pad - N)))

    grid = (M_pad // TM,)
    vmem_limit = int(min(max(vmem_need(TM) + (8 << 20), 32 << 20),
                         vmem_cap - (8 << 20)))

    cost = pl.CostEstimate(
        flops=2 * M_pad * K_pad * N_pad,
        transcendentals=0,
        bytes_accessed=(M_pad * K_pad * cd_itemsize + K_pad * N_pad * cd_itemsize
                        + N_pad * 4 + M_pad * N_pad * out_itemsize))

    out = pl.pallas_call(
        _patch_embed_kernel,
        out_shape=jax.ShapeDtypeStruct((M_pad, N_pad), out_dtype),
        grid_spec=pltpu.PrefetchScalarGridSpec(
            num_scalar_prefetch=0,
            grid=grid,
            in_specs=[
                pl.BlockSpec((TM, K_pad), lambda i: (i, 0)),
                pl.BlockSpec((K_pad, N_pad), lambda i: (0, 0)),
                pl.BlockSpec((1, N_pad), lambda i: (0, 0)),
            ],
            out_specs=pl.BlockSpec((TM, N_pad), lambda i: (i, 0)),
        ),
        compiler_params=pltpu.CompilerParams(
            dimension_semantics=("parallel",),
            vmem_limit_bytes=vmem_limit),
        cost_estimate=cost,
    )(patches_p, w_p, b_p)

    # No-op slices when E % 128 == 0 and M is tile-aligned; consumers that
    # tolerate a padded embed dim could take the (M_pad, N_pad) result directly
    # and skip this extra HBM pass for unaligned E.
    out = out[:M, :N]
    return out.reshape(B, num_patches, E)                 # (B, num_patches, embed_dim)


def reference_forward(x, weight, bias, patch_size, stride):
    """Plain-JAX f32 reference mirroring nn.Conv2d + flatten(2).transpose(1, 2)."""
    y = jax.lax.conv_general_dilated(
        x, weight, window_strides=stride, padding="VALID",
        dimension_numbers=("NCHW", "OIHW", "NCHW"))
    y = y + bias.reshape(1, -1, 1, 1)
    B, E, Gh, Gw = y.shape
    return jnp.transpose(y.reshape(B, E, Gh * Gw), (0, 2, 1))


def reference_forward_mixed(x, weight, bias, patch_size, stride,
                            compute_dtype=jnp.bfloat16):
    """Plain-JAX mirror of the kernel math (bf16 inputs, f32 accumulation)."""
    B, C, H, W = x.shape
    ph, pw = patch_size
    Gh, Gw = H // stride[0], W // stride[1]
    xp = x[:, :, :Gh * ph, :Gw * pw].reshape(B, C, Gh, ph, Gw, pw)
    xp = jnp.transpose(xp, (0, 2, 4, 1, 3, 5)).reshape(B * Gh * Gw, C * ph * pw)
    w = weight.reshape(weight.shape[0], -1).T
    y = jnp.dot(xp.astype(compute_dtype), w.astype(compute_dtype),
                preferred_element_type=jnp.float32) + bias.reshape(1, -1)
    return y.reshape(B, Gh * Gw, -1).astype(x.dtype)


if __name__ == "__main__":
    # small shapes consistent with the module: img 16x16, patch 4, 4 chans, embed 32
    B, C, H, W = 2, 4, 16, 16
    patch_size = (4, 4)
    stride = (4, 4)
    embed_dim = 32

    key = jax.random.PRNGKey(0)
    kx, kw, kb = jax.random.split(key, 3)
    x = jax.random.normal(kx, (B, C, H, W), dtype=jnp.float32)
    # deterministic init mimicking PyTorch Conv2d default (uniform +/- 1/sqrt(fan_in))
    fan_in = C * patch_size[0] * patch_size[1]
    bound = 1.0 / (fan_in ** 0.5)
    weight = jax.random.uniform(kw, (embed_dim, C, patch_size[0], patch_size[1]),
                                dtype=jnp.float32, minval=-bound, maxval=bound)
    bias = jax.random.uniform(kb, (embed_dim,), dtype=jnp.float32,
                              minval=-bound, maxval=bound)

    fwd = jax.jit(functools.partial(patch_embed_forward,
                                    patch_size=patch_size, stride=stride))
    out = jax.block_until_ready(fwd(x, weight, bias))

    assert out.shape == (B, (H // stride[0]) * (W // stride[1]), embed_dim), out.shape

    # tight check against a plain-JAX mirror of the kernel math (bf16 in, f32 acc)
    ref_mixed = jax.block_until_ready(
        reference_forward_mixed(x, weight, bias, patch_size, stride))
    assert jnp.allclose(out, ref_mixed, atol=1e-3, rtol=1e-3), \
        float(jnp.max(jnp.abs(out - ref_mixed)))

    # module-semantics check against the f32 Conv2d reference (bf16-compute tolerance)
    ref = jax.block_until_ready(reference_forward(x, weight, bias, patch_size, stride))
    assert jnp.allclose(out, ref, atol=3e-2, rtol=3e-2), \
        float(jnp.max(jnp.abs(out - ref)))

    print("KERNEL_OK")
</pallas_src>

<mosaic_0001>
module attributes {stable_mosaic.version = 11 : i64} {
  func.func @_patch_embed_kernel(%arg0: i32, %arg1: memref<128x128xbf16, #tpu.memory_space<vmem>>, %arg2: memref<128x128xbf16, #tpu.memory_space<vmem>>, %arg3: memref<1x128xf32, #tpu.memory_space<vmem>>, %arg4: memref<128x128xf32, #tpu.memory_space<vmem>>) attributes {dimension_semantics = [#tpu.dimension_semantics<parallel>], iteration_bounds = array<i64: 1>, scalar_prefetch = 0 : i64, scratch_operands = 0 : i64, tpu.core_type = #tpu.core_type<tc>, window_params = [{transform_indices = @transform_0, window_bounds = array<i64: 128, 128>}, {pipeline_mode = #tpu.pipeline_mode<synchronous>, transform_indices = @transform_1, window_bounds = array<i64: 128, 128>}, {pipeline_mode = #tpu.pipeline_mode<synchronous>, transform_indices = @transform_2, window_bounds = array<i64: 1, 128>}, {transform_indices = @transform_3, window_bounds = array<i64: 128, 128>}]} {
    %c0 = arith.constant 0 : index
    %c0_0 = arith.constant 0 : index
    %0 = vector.load %arg1[%c0, %c0_0] : memref<128x128xbf16, #tpu.memory_space<vmem>>, vector<128x128xbf16>
    %c0_1 = arith.constant 0 : index
    %c0_2 = arith.constant 0 : index
    %1 = vector.load %arg2[%c0_1, %c0_2] : memref<128x128xbf16, #tpu.memory_space<vmem>>, vector<128x128xbf16>
    %cst = arith.constant dense<0.000000e+00> : vector<128x128xf32>
    %2 = tpu.matmul %0, %1, %cst {dimension_numbers = #tpu.dot_dimension_numbers<[1], [0], [0], [1], [0, 0, 1, 1], [], []>} : vector<128x128xbf16>, vector<128x128xbf16>, vector<128x128xf32> -> vector<128x128xf32>
    %c0_3 = arith.constant 0 : index
    %c0_4 = arith.constant 0 : index
    %3 = vector.load %arg3[%c0_3, %c0_4] : memref<1x128xf32, #tpu.memory_space<vmem>>, vector<1x128xf32>
    %4 = vector.broadcast %3 : vector<1x128xf32> to vector<128x128xf32>
    %5 = arith.addf %2, %4 : vector<128x128xf32>
    %c0_5 = arith.constant 0 : index
    %c0_6 = arith.constant 0 : index
    %6 = vector.load %arg4[%c0_5, %c0_6] : memref<128x128xf32, #tpu.memory_space<vmem>>, vector<128x128xf32>
    tpu.vector_store %arg4[%c0_5, %c0_6], %5 {strides = array<i32>} : memref<128x128xf32, #tpu.memory_space<vmem>>, vector<128x128xf32>,
    return
  }
  func.func @transform_0(%arg0: i32) -> (i32, i32) {
    %c0_i32 = arith.constant 0 : i32
    %c0_i32_0 = arith.constant 0 : i32
    return %arg0, %c0_i32 : i32, i32
  }
  func.func @transform_1(%arg0: i32) -> (i32, i32) {
    %c0_i32 = arith.constant 0 : i32
    %c0_i32_0 = arith.constant 0 : i32
    %c0_i32_1 = arith.constant 0 : i32
    return %c0_i32, %c0_i32_0 : i32, i32
  }
  func.func @transform_2(%arg0: i32) -> (i32, i32) {
    %c0_i32 = arith.constant 0 : i32
    %c0_i32_0 = arith.constant 0 : i32
    %c0_i32_1 = arith.constant 0 : i32
    return %c0_i32, %c0_i32_0 : i32, i32
  }
  func.func @transform_3(%arg0: i32) -> (i32, i32) {
    %c0_i32 = arith.constant 0 : i32
    %c0_i32_0 = arith.constant 0 : i32
    return %arg0, %c0_i32 : i32, i32
  }
}

</mosaic_0001>

<llo_original>
// kernel: patch_embed_forward.1
$region0: #{patch_embed_forward.1}
  #allocation0 [shape = 'u32[]', space=smem, size = 0x4, offset = 0x4, fixed_abs, tag = 'smem constant byte address 0x4 - core index']
  #allocation1 [shape = 'u32[144,128]{1,0:T(1,128)}', space=vmem, size = 0x12000, scoped, tag = 'internal scratch']
  %s0 = inlined_call_operand.vmem [shape: bf16[128,128], index: 0, kind: input, shape index: {}]
  %s1 = inlined_call_operand.vmem [shape: bf16[128,128], index: 1, kind: input, shape index: {}]
  %s2 = inlined_call_operand.vmem [shape: f32[1,128], index: 2, kind: input, shape index: {}]
  %s3 = inlined_call_operand.vmem [shape: f32[128,128], index: 3, kind: output, shape index: {}]
  %s4 = sld [smem:[#allocation0]]
  $region22: #{patch_embed_forward.1} parent=0
    _
  %s6 = ssub.s32 1, %s4
  %s7 = scalar_select 0, %s6, %s4
  // Predicated region
  $region2: #{patch_embed_forward.1} parent=0 // pred_check
    _
  $region3: #{patch_embed_forward.1} parent=0 // pred_check_branch
    %9 = sbr.rel (0) target = $region5
  $region4: #{patch_embed_forward.1} parent=0 // pred_region
    _
  $region5: #{patch_embed_forward.1} parent=0 // pred_fallthru
    _
  // Predicated region
  $region6: #{patch_embed_forward.1} parent=0 // pred_check
    _
  $region7: #{patch_embed_forward.1} parent=0 // pred_check_branch
    %11 = sbr.rel (0) target = $region9
  $region8: #{patch_embed_forward.1} parent=0 // pred_region
    _
  $region9: #{patch_embed_forward.1} parent=0 // pred_fallthru
    _
  // Predicated region
  $region10: #{patch_embed_forward.1} parent=0 // pred_check
    _
  $region11: #{patch_embed_forward.1} parent=0 // pred_check_branch
    %13 = sbr.rel (0) target = $region13
  $region12: #{patch_embed_forward.1} parent=0 // pred_region
    _
  $region13: #{patch_embed_forward.1} parent=0 // pred_fallthru
    _
  %v15 = vld [vmem:[%s0] sm:$0xf]
  %v16 = vld [vmem:[%s0 + $0x4] sm:$0xf]
  %v17 = vld [vmem:[%s0 + $0x8] sm:$0xf]
  %v18 = vld [vmem:[%s0 + $0xc] sm:$0xf]
  %v19 = vld [vmem:[%s0 + $0x10] sm:$0xf]
  %v20 = vld [vmem:[%s0 + $0x14] sm:$0xf]
  %v21 = vld [vmem:[%s0 + $0x18] sm:$0xf]
  %v22 = vld [vmem:[%s0 + $0x1c] sm:$0xf]
  %v23 = vld [vmem:[%s0 + $0x20] sm:$0xf]
  %v24 = vld [vmem:[%s0 + $0x24] sm:$0xf]
  %v25 = vld [vmem:[%s0 + $0x28] sm:$0xf]
  %v26 = vld [vmem:[%s0 + $0x2c] sm:$0xf]
  %v27 = vld [vmem:[%s0 + $0x30] sm:$0xf]
  %v28 = vld [vmem:[%s0 + $0x34] sm:$0xf]
  %v29 = vld [vmem:[%s0 + $0x38] sm:$0xf]
  %v30 = vld [vmem:[%s0 + $0x3c] sm:$0xf]
  %v31 = vld [vmem:[%s1] sm:$0xf]
  %v32 = vld [vmem:[%s1 + $0x4] sm:$0xf]
  %v33 = vld [vmem:[%s1 + $0x8] sm:$0xf]
  %v34 = vld [vmem:[%s1 + $0xc] sm:$0xf]
  %v35 = vld [vmem:[%s1 + $0x10] sm:$0xf]
  %v36 = vld [vmem:[%s1 + $0x14] sm:$0xf]
  %v37 = vld [vmem:[%s1 + $0x18] sm:$0xf]
  %v38 = vld [vmem:[%s1 + $0x1c] sm:$0xf]
  %v39 = vld [vmem:[%s1 + $0x20] sm:$0xf]
  %v40 = vld [vmem:[%s1 + $0x24] sm:$0xf]
  %v41 = vld [vmem:[%s1 + $0x28] sm:$0xf]
  %v42 = vld [vmem:[%s1 + $0x2c] sm:$0xf]
  %v43 = vld [vmem:[%s1 + $0x30] sm:$0xf]
  %v44 = vld [vmem:[%s1 + $0x34] sm:$0xf]
  %v45 = vld [vmem:[%s1 + $0x38] sm:$0xf]
  %v46 = vld [vmem:[%s1 + $0x3c] sm:$0xf]
  %v47 = vld [vmem:[%s2] sm:$0x1]
  %v49 = vlaneseq
  %v50 = vshrl.u32 %v49, 7
  %v51 = vsub.s32 0, %v50
  %v52 = vrot.slane %v47, %v51
  %v70 = vunpack.c.l.b16 %v15
  %v71 = vunpack.c.l.b16 %v16
  %v72 = vunpack.c.l.b16 %v17
  %v73 = vunpack.c.l.b16 %v18
  %v74 = vunpack.c.l.b16 %v19
  %v75 = vunpack.c.l.b16 %v20
  %v76 = vunpack.c.l.b16 %v21
  %v77 = vunpack.c.l.b16 %v22
  %v78 = vunpack.c.l.b16 %v23
  %v79 = vunpack.c.l.b16 %v24
  %v80 = vunpack.c.l.b16 %v25
  %v81 = vunpack.c.l.b16 %v26
  %v82 = vunpack.c.l.b16 %v27
  %v83 = vunpack.c.l.b16 %v28
  %v84 = vunpack.c.l.b16 %v29
  %v85 = vunpack.c.l.b16 %v30
  %v86 = vpack.c.b16 %v71, %v70
  %v87 = vpack.c.b16 %v73, %v72
  %v88 = vpack.c.b16 %v75, %v74
  %v89 = vpack.c.b16 %v77, %v76
  %v90 = vpack.c.b16 %v79, %v78
  %v91 = vpack.c.b16 %v81, %v80
  %v92 = vpack.c.b16 %v83, %v82
  %v93 = vpack.c.b16 %v85, %v84
  %v118 = vunpack.c.l.b16 %v31
  %v119 = vunpack.c.l.b16 %v32
  %v120 = vunpack.c.l.b16 %v33
  %v121 = vunpack.c.l.b16 %v34
  %v122 = vunpack.c.l.b16 %v35
  %v123 = vunpack.c.l.b16 %v36
  %v124 = vunpack.c.l.b16 %v37
  %v125 = vunpack.c.l.b16 %v38
  %v126 = vunpack.c.l.b16 %v39
  %v127 = vunpack.c.l.b16 %v40
  %v128 = vunpack.c.l.b16 %v41
  %v129 = vunpack.c.l.b16 %v42
  %v130 = vunpack.c.l.b16 %v43
  %v131 = vunpack.c.l.b16 %v44
  %v132 = vunpack.c.l.b16 %v45
  %v133 = vunpack.c.l.b16 %v46
  %v134 = vpack.c.b16 %v119, %v118
  %v135 = vpack.c.b16 %v121, %v120
  %v136 = vpack.c.b16 %v123, %v122
  %v137 = vpack.c.b16 %v125, %v124
  %v138 = vpack.c.b16 %v127, %v126
  %v139 = vpack.c.b16 %v129, %v128
  %v140 = vpack.c.b16 %v131, %v130
  %v141 = vpack.c.b16 %v133, %v132
  %150 = vmatprep.subr.bf16.mxu0 0
  %151 = vmatpush1.bf16.msra.mxu0 %v134
  %152 = vmatprep.subr.bf16.mxu0 0
  %153 = vmatpush1.bf16.msra.mxu0 %v135
  %154 = vmatprep.subr.bf16.mxu0 0
  %155 = vmatpush1.bf16.msra.mxu0 %v136
  %156 = vmatprep.subr.bf16.mxu0 0
  %157 = vmatpush1.bf16.msra.mxu0 %v137
  %158 = vmatprep.subr.bf16.mxu0 0
  %159 = vmatpush1.bf16.msra.mxu0 %v138
  %160 = vmatprep.subr.bf16.mxu0 0
  %161 = vmatpush1.bf16.msra.mxu0 %v139
  %162 = vmatprep.subr.bf16.mxu0 0
  %163 = vmatpush1.bf16.msra.mxu0 %v140
  %164 = vmatprep.subr.bf16.mxu0 0
  %165 = vmatpush1.bf16.msra.mxu0 %v141
  %166 = vmatprep.subr.bf16.mxu0 0
  %167 = vmatpush1.bf16.msra.mxu0 0
  %168 = vmatprep.subr.bf16.mxu0 0
  %169 = vmatpush1.bf16.msra.mxu0 0
  %170 = vmatprep.subr.bf16.mxu0 0
  %171 = vmatpush1.bf16.msra.mxu0 0
  %172 = vmatprep.subr.bf16.mxu0 0
  %173 = vmatpush1.bf16.msra.mxu0 0
  %174 = vmatprep.subr.bf16.mxu0 0
  %175 = vmatpush1.bf16.msra.mxu0 0
  %176 = vmatprep.subr.bf16.mxu0 0
  %177 = vmatpush1.bf16.msra.mxu0 0
  %178 = vmatprep.subr.bf16.mxu0 0
  %179 = vmatpush1.bf16.msra.mxu0 0
  %180 = vmatprep.subr.bf16.mxu0 0
  %181 = vmatpush1.bf16.msra.mxu0 0
  %182 = vmatprep.mubr.bf16.mxu0 0
  %183 = vmatmul.mubr.bf16.gmra.mrb[0].mxu0 %v86
  %v184 = vpop.f32.mrb[0].mxu0
  %v185 = vadd.f32 %v52, %v184
  %v186 = vpop.f32.mrb[0].mxu0
  %v187 = vpop.f32.mrb[0].mxu0
  %v188 = vadd.f32 %v52, %v187
  %v189 = vpop.f32.mrb[0].mxu0
  %190 = vmatprep.mubr.bf16.mxu0 0
  %191 = vmatmul.mubr.bf16.gmra.mrb[0].mxu0 %v87
  %v192 = vpop.f32.mrb[0].mxu0
  %v193 = vadd.f32 %v52, %v192
  %v194 = vpop.f32.mrb[0].mxu0
  %v195 = vpop.f32.mrb[0].mxu0
  %v196 = vadd.f32 %v52, %v195
  %v197 = vpop.f32.mrb[0].mxu0
  %198 = vmatprep.mubr.bf16.mxu0 0
  %199 = vmatmul.mubr.bf16.gmra.mrb[0].mxu0 %v88
  %v200 = vpop.f32.mrb[0].mxu0
  %v201 = vadd.f32 %v52, %v200
  %v202 = vpop.f32.mrb[0].mxu0
  %v203 = vpop.f32.mrb[0].mxu0
  %v204 = vadd.f32 %v52, %v203
  %v205 = vpop.f32.mrb[0].mxu0
  %206 = vmatprep.mubr.bf16.mxu0 0
  %207 = vmatmul.mubr.bf16.gmra.mrb[0].mxu0 %v89
  %v208 = vpop.f32.mrb[0].mxu0
  %v209 = vadd.f32 %v52, %v208
  %v210 = vpop.f32.mrb[0].mxu0
  %v211 = vpop.f32.mrb[0].mxu0
  %v212 = vadd.f32 %v52, %v211
  %v213 = vpop.f32.mrb[0].mxu0
  %214 = vmatprep.mubr.bf16.mxu0 0
  %215 = vmatmul.mubr.bf16.gmra.mrb[0].mxu0 %v90
  %v216 = vpop.f32.mrb[0].mxu0
  %v217 = vadd.f32 %v52, %v216
  %v218 = vpop.f32.mrb[0].mxu0
  %v219 = vpop.f32.mrb[0].mxu0
  %v220 = vadd.f32 %v52, %v219
  %v221 = vpop.f32.mrb[0].mxu0
  %222 = vmatprep.mubr.bf16.mxu0 0
  %223 = vmatmul.mubr.bf16.gmra.mrb[0].mxu0 %v91
  %v224 = vpop.f32.mrb[0].mxu0
  %v225 = vadd.f32 %v52, %v224
  %v226 = vpop.f32.mrb[0].mxu0
  %v227 = vpop.f32.mrb[0].mxu0
  %v228 = vadd.f32 %v52, %v227
  %v229 = vpop.f32.mrb[0].mxu0
  %230 = vmatprep.mubr.bf16.mxu0 0
  %231 = vmatmul.mubr.bf16.gmra.mrb[0].mxu0 %v92
  %v232 = vpop.f32.mrb[0].mxu0
  %v233 = vadd.f32 %v52, %v232
  %v234 = vpop.f32.mrb[0].mxu0
  %v235 = vpop.f32.mrb[0].mxu0
  %v236 = vadd.f32 %v52, %v235
  %v237 = vpop.f32.mrb[0].mxu0
  %238 = vmatprep.mubr.bf16.mxu0 0
  %239 = vmatmul.mubr.bf16.gmra.mrb[0].mxu0 %v93
  %v240 = vpop.f32.mrb[0].mxu0
  %v241 = vadd.f32 %v52, %v240
  %v242 = vpop.f32.mrb[0].mxu0
  %v243 = vpop.f32.mrb[0].mxu0
  %v244 = vadd.f32 %v52, %v243
  %v245 = vpop.f32.mrb[0].mxu0
  %246 = vdwg.mxu0
  %247 = vst [vmem:[%s3] sm:$0xff] %v185
  %248 = vst [vmem:[%s3 + $0x8] sm:$0xff] %v188
  %249 = vst [vmem:[%s3 + $0x10] sm:$0xff] %v193
  %250 = vst [vmem:[%s3 + $0x18] sm:$0xff] %v196
  %251 = vst [vmem:[%s3 + $0x20] sm:$0xff] %v201
  %252 = vst [vmem:[%s3 + $0x28] sm:$0xff] %v204
  %253 = vst [vmem:[%s3 + $0x30] sm:$0xff] %v209
  %254 = vst [vmem:[%s3 + $0x38] sm:$0xff] %v212
  %255 = vst [vmem:[%s3 + $0x40] sm:$0xff] %v217
  %256 = vst [vmem:[%s3 + $0x48] sm:$0xff] %v220
  %257 = vst [vmem:[%s3 + $0x50] sm:$0xff] %v225
  %258 = vst [vmem:[%s3 + $0x58] sm:$0xff] %v228
  %259 = vst [vmem:[%s3 + $0x60] sm:$0xff] %v233
  %260 = vst [vmem:[%s3 + $0x68] sm:$0xff] %v236
  %261 = vst [vmem:[%s3 + $0x70] sm:$0xff] %v241
  %262 = vst [vmem:[%s3 + $0x78] sm:$0xff] %v244
  // Predicated region
  $region14: #{patch_embed_forward.1} parent=0 // pred_check
    _
  $region15: #{patch_embed_forward.1} parent=0 // pred_check_branch
    %264 = sbr.rel (0) target = $region17
  $region16: #{patch_embed_forward.1} parent=0 // pred_region
    _
  $region17: #{patch_embed_forward.1} parent=0 // pred_fallthru
    _
  // Predicated region
  $region18: #{patch_embed_forward.1} parent=0 // pred_check
    _
  $region19: #{patch_embed_forward.1} parent=0 // pred_check_branch
    %266 = sbr.rel (0) target = $region21
  $region20: #{patch_embed_forward.1} parent=0 // pred_region
    _
  $region21: #{patch_embed_forward.1} parent=0 // pred_fallthru
    _

</llo_original>
